<compile_context>
chip_gen: v7x
topology: tpu7x:2x2x1
jax: 0.10.0
libtpu: 0.0.40
codegen_flags: <defaults>
</compile_context>

<pallas_src>
import functools

import jax
import jax.numpy as jnp
from jax import lax
from jax.experimental import pallas as pl
from jax.experimental.pallas import tpu as pltpu

# Synthetic stand-in for HCV_Num_Possible_Values (feature -> vocab size).
HCV_NUM_POSSIBLE_VALUES = {"feat_a": 5, "feat_b": 7, "feat_c": 11, "feat_d": 13}

_LANES = 128
_SUBLANES = 8
_MAX_TL = 2048            # cap on the lane (position) tile per grid step


def _round_up(x, m):
    return ((x + m - 1) // m) * m


def _cate_encoder_kernel(labels_ref, tables_ref, out_ref, *, num_feats, inv_f):
    # labels_ref : (F, TL) int32   -- labels pre-offset into the stacked vocab axis
    # tables_ref : (D_pad, K) bf16 -- transposed, stacked embedding tables
    # out_ref    : (D_pad, TL) f32 -- one [b, :, l_tile] output tile
    k = tables_ref.shape[1]
    tl = labels_ref.shape[1]

    lab = labels_ref[...]                                     # (F, TL)
    row_iota = lax.broadcasted_iota(jnp.int32, (k, tl), 0)    # vocab id on sublanes

    # Fused one-hot over all features with the 1/F mean folded in.  F is tiny
    # and static -> short VPU loop; compares stay int/f32 (v5e-safe), cast once.
    onehot = jnp.zeros((k, tl), jnp.float32)
    for f in range(num_feats):
        onehot = onehot + jnp.where(lab[f:f + 1, :] == row_iota, inv_f, 0.0)

    # Single bf16 MXU matmul: gather + sum-over-features + mean in one pass.
    acc = jnp.dot(tables_ref[...], onehot.astype(jnp.bfloat16),
                  preferred_element_type=jnp.float32)          # (D_pad, TL) f32
    out_ref[...] = acc.astype(out_ref.dtype)


def _choose_position_tile(L):
    """Lane tile over positions: multiple of 128, <= _MAX_TL, minimal padding."""
    l128 = _round_up(L, _LANES)
    if l128 <= _MAX_TL:
        return l128
    candidates = range(_LANES, _MAX_TL + 1, _LANES)
    # Least total padded work; among ties prefer the largest tile (fewest steps).
    return max(candidates, key=lambda t: (-_round_up(L, t), t))


def cate_encoder_forward(labels, tables_t, *, out_dim, v_pad):
    """labels: int [B, F, L]; tables_t: bf16 [D_pad, K] (K = F*v_pad rounded to 128).

    Returns f32 [B, out_dim, L] (matches the PyTorch forward output layout).
    """
    B, F, L = labels.shape
    D_pad, K = tables_t.shape
    assert D_pad % _SUBLANES == 0 and K % _LANES == 0 and K >= F * v_pad

    TL = _choose_position_tile(L)
    L_pad = _round_up(L, TL)

    # Bake per-feature vocab offsets into the labels; keep native [B, F, L] layout.
    offs = (jnp.arange(F, dtype=jnp.int32) * v_pad)[None, :, None]
    lab = labels.astype(jnp.int32) + offs
    if L_pad != L:
        lab = jnp.pad(lab, ((0, 0), (0, 0), (0, L_pad - L)))   # padded cols sliced off

    kernel = functools.partial(_cate_encoder_kernel, num_feats=F, inv_f=1.0 / F)

    # Per-step VMEM: double-buffered output/labels, single-buffered tables,
    # generous allowance for the one-hot temporaries.
    vmem_need = (2 * D_pad * TL * 4 + 2 * F * TL * 4
                 + D_pad * K * tables_t.dtype.itemsize + 6 * K * TL * 4)
    vmem_limit = int(min(64 * 2 ** 20, max(32 * 2 ** 20, 2 * vmem_need)))

    out = pl.pallas_call(
        kernel,
        out_shape=jax.ShapeDtypeStruct((B, D_pad, L_pad), jnp.float32),
        grid_spec=pltpu.PrefetchScalarGridSpec(
            num_scalar_prefetch=0,
            grid=(B, L_pad // TL),
            in_specs=[
                # One batch row of labels; TL positions on the lanes.
                pl.BlockSpec((None, F, TL), lambda b, lt: (b, 0, lt)),
                # Grid-invariant stacked tables: single-buffered (no point
                # double-buffering a block whose index never changes).
                pl.BlockSpec((D_pad, K), lambda b, lt: (0, 0),
                             pipeline_mode=pl.Buffered(1)),
            ],
            out_specs=pl.BlockSpec((None, D_pad, TL), lambda b, lt: (b, 0, lt)),
        ),
        compiler_params=pltpu.CompilerParams(
            dimension_semantics=("parallel", "parallel"),
            vmem_limit_bytes=vmem_limit,
        ),
    )(lab, tables_t)

    # Epilogue is at most a slice (no transpose, no reshape); a no-op when
    # out_dim % 8 == 0 and L is already a tile multiple.
    return out[:, :out_dim, :L]


def _build_params(out_dim, key):
    """Xavier-uniform embedding tables, stacked along the vocab axis, transposed
    to (D_pad, K) and stored in bf16 (K = F*v_pad rounded up to 128 lanes)."""
    vocab_sizes = list(HCV_NUM_POSSIBLE_VALUES.values())
    num_feats = len(vocab_sizes)
    v_pad = _round_up(max(vocab_sizes), _SUBLANES)
    k_pad = _round_up(num_feats * v_pad, _LANES)
    d_pad = _round_up(out_dim, _SUBLANES)

    keys = jax.random.split(key, num_feats)
    tables = []
    for k, v in zip(keys, vocab_sizes):
        bound = (6.0 / (v + out_dim)) ** 0.5      # xavier_uniform_
        w = jax.random.uniform(k, (v, out_dim), jnp.float32, -bound, bound)
        tables.append(jnp.pad(w, ((0, v_pad - v), (0, d_pad - out_dim))))
    stacked = jnp.concatenate(tables, axis=0)                  # (F*v_pad, d_pad)
    stacked = jnp.pad(stacked, ((0, k_pad - num_feats * v_pad), (0, 0)))
    tables_t = jnp.transpose(stacked).astype(jnp.bfloat16)     # (d_pad, k_pad)
    return tables_t, vocab_sizes, v_pad


def _reference(labels, tables_t, vocab_sizes, v_pad, out_dim):
    # Plain-JAX reference of the PyTorch forward, using the same (bf16) tables.
    tabs = jnp.transpose(tables_t.astype(jnp.float32))         # (K, d_pad)
    embs = []
    for f in range(labels.shape[1]):
        tab = tabs[f * v_pad:(f + 1) * v_pad, :out_dim]
        embs.append(jnp.take(tab, labels[:, f, :], axis=0))    # [B, L, D]
    mean = jnp.stack(embs, axis=1).mean(axis=1)                 # [B, L, D]
    return jnp.transpose(mean, (0, 2, 1))                       # [B, D, L]


if __name__ == "__main__":
    B, L, OUT_DIM = 2, 8, 32
    key = jax.random.PRNGKey(0)
    k_tab, k_lab = jax.random.split(key)

    tables_t, vocab_sizes, v_pad = _build_params(OUT_DIM, k_tab)   # (32, 128) bf16
    F = len(vocab_sizes)

    lab_keys = jax.random.split(k_lab, F)
    labels = jnp.stack(
        [jax.random.randint(lab_keys[f], (B, L), 0, vocab_sizes[f], jnp.int32)
         for f in range(F)],
        axis=1,
    )  # [B, F, L] int32 (PyTorch contract is int64; int32 suffices for these vocabs)

    out = cate_encoder_forward(labels, tables_t, out_dim=OUT_DIM, v_pad=v_pad)
    out = jax.block_until_ready(out)

    ref = _reference(labels, tables_t, vocab_sizes, v_pad, OUT_DIM)
    assert out.shape == (B, OUT_DIM, L), out.shape
    assert jnp.allclose(out, ref, atol=1e-5, rtol=1e-5), "mismatch vs reference"
    print("KERNEL_OK")
</pallas_src>

<mosaic_0001>
module attributes {stable_mosaic.version = 11 : i64} {
  func.func @_cate_encoder_kernel(%arg0: i32, %arg1: i32, %arg2: memref<1x4x128xi32, #tpu.memory_space<vmem>>, %arg3: memref<32x128xbf16, #tpu.memory_space<vmem>>, %arg4: memref<1x32x128xf32, #tpu.memory_space<vmem>>) attributes {dimension_semantics = [#tpu.dimension_semantics<parallel>, #tpu.dimension_semantics<parallel>], iteration_bounds = array<i64: 2, 1>, scalar_prefetch = 0 : i64, scratch_operands = 0 : i64, tpu.core_type = #tpu.core_type<tc>, window_params = [{transform_indices = @transform_0, window_bounds = array<i64: 1, 4, 128>}, {pipeline_mode = #tpu.pipeline_mode<synchronous>, transform_indices = @transform_1, window_bounds = array<i64: 32, 128>}, {transform_indices = @transform_2, window_bounds = array<i64: 1, 32, 128>}]} {
    %c0 = arith.constant 0 : index
    %c0_0 = arith.constant 0 : index
    %c0_1 = arith.constant 0 : index
    %0 = vector.load %arg2[%c0, %c0_0, %c0_1] : memref<1x4x128xi32, #tpu.memory_space<vmem>>, vector<1x4x128xi32>
    %1 = vector.shape_cast %0 : vector<1x4x128xi32> to vector<4x128xi32>
    %2 = tpu.iota {dimensions = array<i32: 0>} : vector<128x128xi32>
    %cst = arith.constant 0.000000e+00 : f32
    %3 = vector.broadcast %cst : f32 to vector<128x128xf32>
    %4 = vector.extract_strided_slice %1 {offsets = [0, 0], sizes = [1, 128], strides = [1, 1]} : vector<4x128xi32> to vector<1x128xi32>
    %5 = vector.broadcast %4 : vector<1x128xi32> to vector<128x128xi32>
    %6 = arith.cmpi eq, %5, %2 : vector<128x128xi32>
    %cst_2 = arith.constant 2.500000e-01 : f32
    %cst_3 = arith.constant 0.000000e+00 : f32
    %7 = vector.broadcast %cst_2 : f32 to vector<128x128xf32>
    %8 = vector.broadcast %cst_3 : f32 to vector<128x128xf32>
    %9 = arith.select %6, %7, %8 : vector<128x128xi1>, vector<128x128xf32>
    %10 = arith.addf %3, %9 : vector<128x128xf32>
    %11 = vector.extract_strided_slice %1 {offsets = [1, 0], sizes = [1, 128], strides = [1, 1]} : vector<4x128xi32> to vector<1x128xi32>
    %12 = vector.broadcast %11 : vector<1x128xi32> to vector<128x128xi32>
    %13 = arith.cmpi eq, %12, %2 : vector<128x128xi32>
    %cst_4 = arith.constant 2.500000e-01 : f32
    %cst_5 = arith.constant 0.000000e+00 : f32
    %14 = vector.broadcast %cst_4 : f32 to vector<128x128xf32>
    %15 = vector.broadcast %cst_5 : f32 to vector<128x128xf32>
    %16 = arith.select %13, %14, %15 : vector<128x128xi1>, vector<128x128xf32>
    %17 = arith.addf %10, %16 : vector<128x128xf32>
    %18 = vector.extract_strided_slice %1 {offsets = [2, 0], sizes = [1, 128], strides = [1, 1]} : vector<4x128xi32> to vector<1x128xi32>
    %19 = vector.broadcast %18 : vector<1x128xi32> to vector<128x128xi32>
    %20 = arith.cmpi eq, %19, %2 : vector<128x128xi32>
    %cst_6 = arith.constant 2.500000e-01 : f32
    %cst_7 = arith.constant 0.000000e+00 : f32
    %21 = vector.broadcast %cst_6 : f32 to vector<128x128xf32>
    %22 = vector.broadcast %cst_7 : f32 to vector<128x128xf32>
    %23 = arith.select %20, %21, %22 : vector<128x128xi1>, vector<128x128xf32>
    %24 = arith.addf %17, %23 : vector<128x128xf32>
    %25 = vector.extract_strided_slice %1 {offsets = [3, 0], sizes = [1, 128], strides = [1, 1]} : vector<4x128xi32> to vector<1x128xi32>
    %26 = vector.broadcast %25 : vector<1x128xi32> to vector<128x128xi32>
    %27 = arith.cmpi eq, %26, %2 : vector<128x128xi32>
    %cst_8 = arith.constant 2.500000e-01 : f32
    %cst_9 = arith.constant 0.000000e+00 : f32
    %28 = vector.broadcast %cst_8 : f32 to vector<128x128xf32>
    %29 = vector.broadcast %cst_9 : f32 to vector<128x128xf32>
    %30 = arith.select %27, %28, %29 : vector<128x128xi1>, vector<128x128xf32>
    %31 = arith.addf %24, %30 : vector<128x128xf32>
    %c0_10 = arith.constant 0 : index
    %c0_11 = arith.constant 0 : index
    %32 = vector.load %arg3[%c0_10, %c0_11] : memref<32x128xbf16, #tpu.memory_space<vmem>>, vector<32x128xbf16>
    %33 = arith.truncf %31 : vector<128x128xf32> to vector<128x128xbf16>
    %cst_12 = arith.constant dense<0.000000e+00> : vector<32x128xf32>
    %34 = tpu.matmul %32, %33, %cst_12 {dimension_numbers = #tpu.dot_dimension_numbers<[1], [0], [0], [1], [0, 0, 1, 1], [], []>} : vector<32x128xbf16>, vector<128x128xbf16>, vector<32x128xf32> -> vector<32x128xf32>
    %c0_13 = arith.constant 0 : index
    %c0_14 = arith.constant 0 : index
    %c0_15 = arith.constant 0 : index
    %35 = vector.load %arg4[%c0_13, %c0_14, %c0_15] : memref<1x32x128xf32, #tpu.memory_space<vmem>>, vector<1x32x128xf32>
    %36 = vector.shape_cast %35 : vector<1x32x128xf32> to vector<32x128xf32>
    %37 = vector.shape_cast %34 : vector<32x128xf32> to vector<1x32x128xf32>
    tpu.vector_store %arg4[%c0_13, %c0_14, %c0_15], %37 {strides = array<i32>} : memref<1x32x128xf32, #tpu.memory_space<vmem>>, vector<1x32x128xf32>,
    return
  }
  func.func @transform_0(%arg0: i32, %arg1: i32) -> (i32, i32, i32) {
    %c0_i32 = arith.constant 0 : i32
    %c0_i32_0 = arith.constant 0 : i32
    return %arg0, %c0_i32, %arg1 : i32, i32, i32
  }
  func.func @transform_1(%arg0: i32, %arg1: i32) -> (i32, i32) {
    %c0_i32 = arith.constant 0 : i32
    %c0_i32_0 = arith.constant 0 : i32
    %c0_i32_1 = arith.constant 0 : i32
    return %c0_i32, %c0_i32_0 : i32, i32
  }
  func.func @transform_2(%arg0: i32, %arg1: i32) -> (i32, i32, i32) {
    %c0_i32 = arith.constant 0 : i32
    %c0_i32_0 = arith.constant 0 : i32
    return %arg0, %c0_i32, %arg1 : i32, i32, i32
  }
}

</mosaic_0001>

<llo_original>
// kernel: tpu_custom_call.1
$region0: #{tpu_custom_call.1}
  #allocation0 [shape = 'u32[]', space=smem, size = 0x4, offset = 0x4, fixed_abs, tag = 'smem constant byte address 0x4 - core index']
  #allocation1 [shape = 'u32[144,128]{1,0:T(1,128)}', space=vmem, size = 0x12000, scoped, tag = 'internal scratch']
  %s0 = inlined_call_operand.hbm [shape: s32[2,4,128], index: 0, kind: input, shape index: {}]
  %s1 = inlined_call_operand.hbm [shape: bf16[32,128], index: 1, kind: input, shape index: {}]
  %s2 = inlined_call_operand.hbm [shape: f32[2,32,128], index: 2, kind: output, shape index: {}]
  %s3 = sld [smem:[#allocation0]]
  $region49: #{tpu_custom_call.1} parent=0
    _
  %s5 = ssub.s32 1, %s3
  %s6 = scalar_select 0, %s5, %s3
  $region1: #{tpu_custom_call.1} parent=0
    #allocation2 [shape = 'u8[4096]{0}', space=vmem, size = 0x1000, scoped, tag = 'input window, operand 0']
    #allocation3 [shape = 's32[2]{0}', space=sflag, size = 0x8, scoped, tag = 'scoped memory for tpu_custom_call.1']
    #allocation4 [shape = 's32[2]{0}', space=sflag, size = 0x8, scoped, tag = 'scoped memory for tpu_custom_call.1']
    #allocation5 [shape = 'u8[8192]{0}', space=vmem, size = 0x2000, scoped, tag = 'input window, operand 1, single buffered']
    #allocation6 [shape = 's32[1]{0}', space=sflag, size = 0x4, scoped, tag = 'scoped memory for tpu_custom_call.1']
    #allocation7 [shape = 'u8[32768]{0}', space=vmem, size = 0x8000, scoped, tag = 'output window, operand 0']
    %7 = vsyncpa [#allocation3], 0
    %s8 = scalar_lea.sflag [#allocation3], 1
    %9 = vsyncpa %s8, 0
    %10 = vsyncpa [#allocation6], 0
    %11 = vsyncpa [#allocation4], 0
    %s12 = scalar_lea.sflag [#allocation4], 1
    %13 = vsyncpa %s12, 0
    loop: start=0, step=1, limit=4
    $region2: #{tpu_custom_call.1} parent=1 // loop_pre_header
      _
    $region3: #{tpu_custom_call.1} parent=1 // loop_header
      %s15 = sphi 0, %s19
      %p16 = scmp.ge.s32.totalorder %s15, 4
      %s22 = sphi 0, %s34
      %s23 = sphi 0, %s30
      %s24 = sphi 0, %s22
      %s25 = sphi 0, %s23
      %s26 = sphi 0, %s24
      %s27 = sphi 0, %s25
      %s39 = sphi 0, %s41
      %s42 = sphi 0, %s39
      %s43 = sphi 0, %s42
      %s59 = sphi 0, %s43
      %s63 = sphi 0, %s63
      %s65 = sphi 0, %s63
      %s66 = sphi 0, %s65
      %s80 = sphi 0, %s66
      %s88 = sphi 0, %s90
      %s91 = sphi 0, %s88
      %s92 = sphi 0, %s91
      %s108 = sphi 0, %s92
    $region4: #{tpu_custom_call.1} parent=1 // loop_header_branch
      %18 = sbr.rel (%p16) target = $region8
    $region5: #{tpu_custom_call.1} parent=1 // loop_body
      %s20 = ssub.s32 %s15, 1
      %s21 = ssub.s32 %s15, 2
      %s28 = sadd.s32 1, %s23
      %p29 = scmp.ge.s32.totalorder %s28, 1
      %s30 = scalar_select %p29, 0, %s28
      %s31 = sadd.s32 1, %s22
      %s32 = scalar_select %p29, %s31, %s22
      %p33 = scmp.ge.s32.totalorder %s32, 2
      %s34 = scalar_select %p33, 0, %s32
      %s35 = ssub.s32 %s22, %s34
      %s36 = ssub.s32 %s23, %s30
      %s37 = sor.u32 %s35, %s36
      %p38 = scmp.eq.s32.totalorder %s37, 0
      %s40 = sadd.s32 %s39, 1
      %s41 = scalar_select %p38, %s39, %s40
      %p44 = pneg %p38
      %p45 = scmp.eq.s32.totalorder %s15, 1
      %p46 = por %p44, %p45
      %p47 = scmp.ne.s32.totalorder %s39, %s42
      %p48 = scmp.eq.s32.totalorder %s15, 0
      %p49 = por %p47, %p48
      %p50 = scmp.ne.s32.totalorder %s39, %s42
      %p51 = scmp.eq.s32.totalorder %s20, 1
      %p52 = por %p50, %p51
      %p53 = scmp.ne.s32.totalorder %s42, %s43
      %p54 = scmp.eq.s32.totalorder %s20, 0
      %p55 = por %p53, %p54
      %p56 = scmp.ne.s32.totalorder %s42, %s43
      %p57 = scmp.eq.s32.totalorder %s21, 1
      %p58 = por %p56, %p57
      %p60 = scmp.ne.s32.totalorder %s43, %s59
      %p61 = scmp.eq.s32.totalorder %s21, 0
      %p62 = por %p60, %p61
      %s64 = sadd.s32 %s63, 1
      %p67 = scmp.eq.s32.totalorder %s15, 1
      %p68 = scmp.ne.s32.totalorder %s63, %s65
      %p69 = scmp.eq.s32.totalorder %s15, 0
      %p70 = por %p68, %p69
      %p71 = scmp.ne.s32.totalorder %s63, %s65
      %p72 = scmp.eq.s32.totalorder %s20, 1
      %p73 = por %p71, %p72
      %p74 = scmp.ne.s32.totalorder %s65, %s66
      %p75 = scmp.eq.s32.totalorder %s20, 0
      %p76 = por %p74, %p75
      %p77 = scmp.ne.s32.totalorder %s65, %s66
      %p78 = scmp.eq.s32.totalorder %s21, 1
      %p79 = por %p77, %p78
      %p81 = scmp.ne.s32.totalorder %s66, %s80
      %p82 = scmp.eq.s32.totalorder %s21, 0
      %p83 = por %p81, %p82
      %s84 = ssub.s32 %s22, %s34
      %s85 = ssub.s32 %s23, %s30
      %s86 = sor.u32 %s84, %s85
      %p87 = scmp.eq.s32.totalorder %s86, 0
      %s89 = sadd.s32 %s88, 1
      %s90 = scalar_select %p87, %s88, %s89
      %p93 = pneg %p87
      %p94 = scmp.eq.s32.totalorder %s15, 1
      %p95 = por %p93, %p94
      %p96 = scmp.ne.s32.totalorder %s88, %s91
      %p97 = scmp.eq.s32.totalorder %s15, 0
      %p98 = por %p96, %p97
      %p99 = scmp.ne.s32.totalorder %s88, %s91
      %p100 = scmp.eq.s32.totalorder %s20, 1
      %p101 = por %p99, %p100
      %p102 = scmp.ne.s32.totalorder %s91, %s92
      %p103 = scmp.eq.s32.totalorder %s20, 0
      %p104 = por %p102, %p103
      %p105 = scmp.ne.s32.totalorder %s91, %s92
      %p106 = scmp.eq.s32.totalorder %s21, 1
      %p107 = por %p105, %p106
      %p109 = scmp.ne.s32.totalorder %s92, %s108
      %p110 = scmp.eq.s32.totalorder %s21, 0
      %p111 = por %p109, %p110
      %p112 = scmp.le.s32.totalorder 1, %s15
      %p113 = scmp.lt.s32.totalorder %s15, 3
      %p114 = pnand %p112, %p113
      %p115 = pneg %p114
      // Predicated region
      $region9: #{tpu_custom_call.1} parent=5 // pred_check
        _
      $region10: #{tpu_custom_call.1} parent=5 // pred_check_branch
        %117 = sbr.rel (%p114) target = $region12
      $region11: #{tpu_custom_call.1} parent=5 // pred_region
        %s118 = ssub.s32 %s15, 1
        // Predicated region
        $region13: #{tpu_custom_call.1} parent=11 // pred_check
          %p119 = pneg %p76
        $region14: #{tpu_custom_call.1} parent=11 // pred_check_branch
          %121 = sbr.rel (%p119) target = $region16
        $region15: #{tpu_custom_call.1} parent=11 // pred_region
          %s123 = ssub.s32 256, 256
          %124 = vsyncadd [#allocation6], %s123
          %s125 = sshll.u32 [#allocation5], 4
          %s126 = int_to_ptr.vmem [resolvable:$true] %s125
          %131 = dma.hbm_to_vmem [thread:$0]  %s1, 256, %s126, [#allocation6], 64, 64, 4
        $region16: #{tpu_custom_call.1} parent=11 // pred_fallthru
          _
      $region12: #{tpu_custom_call.1} parent=5 // pred_fallthru
        _
      %p132 = scmp.lt.s32.totalorder %s15, 2
      // Predicated region
      $region17: #{tpu_custom_call.1} parent=5 // pred_check
        %p133 = pneg %p132
      $region18: #{tpu_custom_call.1} parent=5 // pred_check_branch
        %135 = sbr.rel (%p133) target = $region20
      $region19: #{tpu_custom_call.1} parent=5 // pred_region
        // Predicated region
        $region21: #{tpu_custom_call.1} parent=19 // pred_check
          %p136 = pneg %p49
        $region22: #{tpu_custom_call.1} parent=19 // pred_check_branch
          %138 = sbr.rel (%p136) target = $region24
        $region23: #{tpu_custom_call.1} parent=19 // pred_region
          %s139 = sand.u32 %s39, 1
          %s140 = scalar_lea.sflag [#allocation3], %s139
          %s141 = sand.u32 %s39, 1
          %s142 = smul.addr %s141, 4
          %s143 = scalar_lea.vmem [#allocation2], %s142
          %s145 = ssub.s32 64, 64
          %146 = vsyncadd %s140, %s145
          %s147 = sadd.s32 %s23, %s22
          %s148 = smul.addr %s147, 64
          %s149 = scalar_lea.hbm %s0, %s148
          %s151 = sshll.u32 %s143, 4
          %s152 = int_to_ptr.vmem [resolvable:$true] %s151
          %154 = dma.hbm_to_vmem [thread:$0]  %s149, 64, %s152, %s140
        $region24: #{tpu_custom_call.1} parent=19 // pred_fallthru
          _
      $region20: #{tpu_custom_call.1} parent=5 // pred_fallthru
        _
      %p155 = scmp.le.s32.totalorder 1, %s15
      %p156 = scmp.lt.s32.totalorder %s15, 3
      %p157 = pnand %p155, %p156
      %p158 = pneg %p157
      // Predicated region
      $region25: #{tpu_custom_call.1} parent=5 // pred_check
        _
      $region26: #{tpu_custom_call.1} parent=5 // pred_check_branch
        %160 = sbr.rel (%p157) target = $region28
      $region27: #{tpu_custom_call.1} parent=5 // pred_region
        %s161 = ssub.s32 %s15, 1
        %s162 = sand.u32 %s42, 1
        %s163 = scalar_lea.sflag [#allocation3], %s162
        %s164 = sand.u32 %s42, 1
        %s165 = smul.addr %s164, 4
        %s166 = scalar_lea.vmem [#allocation2], %s165
        // Predicated region
        $region29: #{tpu_custom_call.1} parent=27 // pred_check
          %p167 = pneg %p55
        $region30: #{tpu_custom_call.1} parent=27 // pred_check_branch
          %169 = sbr.rel (%p167) target = $region32
        $region31: #{tpu_custom_call.1} parent=27 // pred_region
          %170 = dma.done %s163, 64
        $region32: #{tpu_custom_call.1} parent=27 // pred_fallthru
          _
        // Predicated region
        $region33: #{tpu_custom_call.1} parent=27 // pred_check
          %p171 = pneg %p76
        $region34: #{tpu_custom_call.1} parent=27 // pred_check_branch
          %173 = sbr.rel (%p171) target = $region36
        $region35: #{tpu_custom_call.1} parent=27 // pred_region
          %174 = dma.done [#allocation6], 256
        $region36: #{tpu_custom_call.1} parent=27 // pred_fallthru
          _
        %s175 = sand.u32 %s42, 1
        %s176 = scalar_lea.sflag [#allocation3], %s175
        %s177 = sand.u32 %s42, 1
        %s178 = smul.addr %s177, 4
        %s179 = scalar_lea.vmem [#allocation2], %s178
        %p180 = pneg %p55
        %p181 = pneg %p52
        %p182 = pneg %p76
        %p183 = pneg %p73
        %p184 = pneg %p104
        %p185 = pneg %p101
        %s186 = sand.u32 %s91, 1
        %s187 = scalar_lea.sflag [#allocation4], %s186
        %s188 = sand.u32 %s91, 1
        %s189 = smul.addr %s188, 32
        %s190 = scalar_lea.vmem [#allocation7], %s189
        %v192 = vld [vmem:[%s166] sm:$0xf]
        %v193 = vlaneseq
        %v194 = vshrl.u32 %v193, 7
        %v195 = vadd.s32 %v194, 8
        %v196 = vadd.s32 %v194, 16
        %v197 = vadd.s32 %v194, 24
        %v198 = vadd.s32 %v194, 32
        %v199 = vadd.s32 %v194, 40
        %v200 = vadd.s32 %v194, 48
        %v201 = vadd.s32 %v194, 56
        %v202 = vadd.s32 %v194, 64
        %v203 = vadd.s32 %v194, 72
        %v204 = vadd.s32 %v194, 80
        %v205 = vadd.s32 %v194, 88
        %v206 = vadd.s32 %v194, 96
        %v207 = vadd.s32 %v194, 104
        %v208 = vadd.s32 %v194, 112
        %v209 = vadd.s32 %v194, 120
        %v210 = vlaneseq
        %v211 = vshrl.u32 %v210, 7
        %v212 = vsub.s32 0, %v211
        %v213 = vrot.slane %v192, %v212
        %vm214 = vcmp.eq.s32.totalorder %v213, %v194
        %vm215 = vcmp.eq.s32.totalorder %v213, %v195
        %vm216 = vcmp.eq.s32.totalorder %v213, %v196
        %vm217 = vcmp.eq.s32.totalorder %v213, %v197
        %vm218 = vcmp.eq.s32.totalorder %v213, %v198
        %vm219 = vcmp.eq.s32.totalorder %v213, %v199
        %vm220 = vcmp.eq.s32.totalorder %v213, %v200
        %vm221 = vcmp.eq.s32.totalorder %v213, %v201
        %vm222 = vcmp.eq.s32.totalorder %v213, %v202
        %vm223 = vcmp.eq.s32.totalorder %v213, %v203
        %vm224 = vcmp.eq.s32.totalorder %v213, %v204
        %vm225 = vcmp.eq.s32.totalorder %v213, %v205
        %vm226 = vcmp.eq.s32.totalorder %v213, %v206
        %vm227 = vcmp.eq.s32.totalorder %v213, %v207
        %vm228 = vcmp.eq.s32.totalorder %v213, %v208
        %vm229 = vcmp.eq.s32.totalorder %v213, %v209
        %v230 = vsel %vm214, 0.25, 0.0
        %v231 = vsel %vm215, 0.25, 0.0
        %v232 = vsel %vm216, 0.25, 0.0
        %v233 = vsel %vm217, 0.25, 0.0
        %v234 = vsel %vm218, 0.25, 0.0
        %v235 = vsel %vm219, 0.25, 0.0
        %v236 = vsel %vm220, 0.25, 0.0
        %v237 = vsel %vm221, 0.25, 0.0
        %v238 = vsel %vm222, 0.25, 0.0
        %v239 = vsel %vm223, 0.25, 0.0
        %v240 = vsel %vm224, 0.25, 0.0
        %v241 = vsel %vm225, 0.25, 0.0
        %v242 = vsel %vm226, 0.25, 0.0
        %v243 = vsel %vm227, 0.25, 0.0
        %v244 = vsel %vm228, 0.25, 0.0
        %v245 = vsel %vm229, 0.25, 0.0
        %v246 = vadd.f32 %v230, 0.0
        %v247 = vadd.f32 %v231, 0.0
        %v248 = vadd.f32 %v232, 0.0
        %v249 = vadd.f32 %v233, 0.0
        %v250 = vadd.f32 %v234, 0.0
        %v251 = vadd.f32 %v235, 0.0
        %v252 = vadd.f32 %v236, 0.0
        %v253 = vadd.f32 %v237, 0.0
        %v254 = vadd.f32 %v238, 0.0
        %v255 = vadd.f32 %v239, 0.0
        %v256 = vadd.f32 %v240, 0.0
        %v257 = vadd.f32 %v241, 0.0
        %v258 = vadd.f32 %v242, 0.0
        %v259 = vadd.f32 %v243, 0.0
        %v260 = vadd.f32 %v244, 0.0
        %v261 = vadd.f32 %v245, 0.0
        %v262 = vlaneseq
        %v263 = vshrl.u32 %v262, 7
        %v264 = vsub.s32 1, %v263
        %v265 = vrot.slane %v192, %v264
        %vm266 = vcmp.eq.s32.totalorder %v265, %v194
        %vm267 = vcmp.eq.s32.totalorder %v265, %v195
        %vm268 = vcmp.eq.s32.totalorder %v265, %v196
        %vm269 = vcmp.eq.s32.totalorder %v265, %v197
        %vm270 = vcmp.eq.s32.totalorder %v265, %v198
        %vm271 = vcmp.eq.s32.totalorder %v265, %v199
        %vm272 = vcmp.eq.s32.totalorder %v265, %v200
        %vm273 = vcmp.eq.s32.totalorder %v265, %v201
        %vm274 = vcmp.eq.s32.totalorder %v265, %v202
        %vm275 = vcmp.eq.s32.totalorder %v265, %v203
        %vm276 = vcmp.eq.s32.totalorder %v265, %v204
        %vm277 = vcmp.eq.s32.totalorder %v265, %v205
        %vm278 = vcmp.eq.s32.totalorder %v265, %v206
        %vm279 = vcmp.eq.s32.totalorder %v265, %v207
        %vm280 = vcmp.eq.s32.totalorder %v265, %v208
        %vm281 = vcmp.eq.s32.totalorder %v265, %v209
        %v282 = vsel %vm266, 0.25, 0.0
        %v283 = vsel %vm267, 0.25, 0.0
        %v284 = vsel %vm268, 0.25, 0.0
        %v285 = vsel %vm269, 0.25, 0.0
        %v286 = vsel %vm270, 0.25, 0.0
        %v287 = vsel %vm271, 0.25, 0.0
        %v288 = vsel %vm272, 0.25, 0.0
        %v289 = vsel %vm273, 0.25, 0.0
        %v290 = vsel %vm274, 0.25, 0.0
        %v291 = vsel %vm275, 0.25, 0.0
        %v292 = vsel %vm276, 0.25, 0.0
        %v293 = vsel %vm277, 0.25, 0.0
        %v294 = vsel %vm278, 0.25, 0.0
        %v295 = vsel %vm279, 0.25, 0.0
        %v296 = vsel %vm280, 0.25, 0.0
        %v297 = vsel %vm281, 0.25, 0.0
        %v298 = vadd.f32 %v246, %v282
        %v299 = vadd.f32 %v247, %v283
        %v300 = vadd.f32 %v248, %v284
        %v301 = vadd.f32 %v249, %v285
        %v302 = vadd.f32 %v250, %v286
        %v303 = vadd.f32 %v251, %v287
        %v304 = vadd.f32 %v252, %v288
        %v305 = vadd.f32 %v253, %v289
        %v306 = vadd.f32 %v254, %v290
        %v307 = vadd.f32 %v255, %v291
        %v308 = vadd.f32 %v256, %v292
        %v309 = vadd.f32 %v257, %v293
        %v310 = vadd.f32 %v258, %v294
        %v311 = vadd.f32 %v259, %v295
        %v312 = vadd.f32 %v260, %v296
        %v313 = vadd.f32 %v261, %v297
        %v314 = vlaneseq
        %v315 = vshrl.u32 %v314, 7
        %v316 = vsub.s32 2, %v315
        %v317 = vrot.slane %v192, %v316
        %vm318 = vcmp.eq.s32.totalorder %v317, %v194
        %vm319 = vcmp.eq.s32.totalorder %v317, %v195
        %vm320 = vcmp.eq.s32.totalorder %v317, %v196
        %vm321 = vcmp.eq.s32.totalorder %v317, %v197
        %vm322 = vcmp.eq.s32.totalorder %v317, %v198
        %vm323 = vcmp.eq.s32.totalorder %v317, %v199
        %vm324 = vcmp.eq.s32.totalorder %v317, %v200
        %vm325 = vcmp.eq.s32.totalorder %v317, %v201
        %vm326 = vcmp.eq.s32.totalorder %v317, %v202
        %vm327 = vcmp.eq.s32.totalorder %v317, %v203
        %vm328 = vcmp.eq.s32.totalorder %v317, %v204
        %vm329 = vcmp.eq.s32.totalorder %v317, %v205
        %vm330 = vcmp.eq.s32.totalorder %v317, %v206
        %vm331 = vcmp.eq.s32.totalorder %v317, %v207
        %vm332 = vcmp.eq.s32.totalorder %v317, %v208
        %vm333 = vcmp.eq.s32.totalorder %v317, %v209
        %v334 = vsel %vm318, 0.25, 0.0
        %v335 = vsel %vm319, 0.25, 0.0
        %v336 = vsel %vm320, 0.25, 0.0
        %v337 = vsel %vm321, 0.25, 0.0
        %v338 = vsel %vm322, 0.25, 0.0
        %v339 = vsel %vm323, 0.25, 0.0
        %v340 = vsel %vm324, 0.25, 0.0
        %v341 = vsel %vm325, 0.25, 0.0
        %v342 = vsel %vm326, 0.25, 0.0
        %v343 = vsel %vm327, 0.25, 0.0
        %v344 = vsel %vm328, 0.25, 0.0
        %v345 = vsel %vm329, 0.25, 0.0
        %v346 = vsel %vm330, 0.25, 0.0
        %v347 = vsel %vm331, 0.25, 0.0
        %v348 = vsel %vm332, 0.25, 0.0
        %v349 = vsel %vm333, 0.25, 0.0
        %v350 = vadd.f32 %v298, %v334
        %v351 = vadd.f32 %v299, %v335
        %v352 = vadd.f32 %v300, %v336
        %v353 = vadd.f32 %v301, %v337
        %v354 = vadd.f32 %v302, %v338
        %v355 = vadd.f32 %v303, %v339
        %v356 = vadd.f32 %v304, %v340
        %v357 = vadd.f32 %v305, %v341
        %v358 = vadd.f32 %v306, %v342
        %v359 = vadd.f32 %v307, %v343
        %v360 = vadd.f32 %v308, %v344
        %v361 = vadd.f32 %v309, %v345
        %v362 = vadd.f32 %v310, %v346
        %v363 = vadd.f32 %v311, %v347
        %v364 = vadd.f32 %v312, %v348
        %v365 = vadd.f32 %v313, %v349
        %v366 = vlaneseq
        %v367 = vshrl.u32 %v366, 7
        %v368 = vsub.s32 3, %v367
        %v369 = vrot.slane %v192, %v368
        %vm370 = vcmp.eq.s32.totalorder %v369, %v194
        %vm371 = vcmp.eq.s32.totalorder %v369, %v195
        %vm372 = vcmp.eq.s32.totalorder %v369, %v196
        %vm373 = vcmp.eq.s32.totalorder %v369, %v197
        %vm374 = vcmp.eq.s32.totalorder %v369, %v198
        %vm375 = vcmp.eq.s32.totalorder %v369, %v199
        %vm376 = vcmp.eq.s32.totalorder %v369, %v200
        %vm377 = vcmp.eq.s32.totalorder %v369, %v201
        %vm378 = vcmp.eq.s32.totalorder %v369, %v202
        %vm379 = vcmp.eq.s32.totalorder %v369, %v203
        %vm380 = vcmp.eq.s32.totalorder %v369, %v204
        %vm381 = vcmp.eq.s32.totalorder %v369, %v205
        %vm382 = vcmp.eq.s32.totalorder %v369, %v206
        %vm383 = vcmp.eq.s32.totalorder %v369, %v207
        %vm384 = vcmp.eq.s32.totalorder %v369, %v208
        %vm385 = vcmp.eq.s32.totalorder %v369, %v209
        %v386 = vsel %vm370, 0.25, 0.0
        %v387 = vsel %vm371, 0.25, 0.0
        %v388 = vsel %vm372, 0.25, 0.0
        %v389 = vsel %vm373, 0.25, 0.0
        %v390 = vsel %vm374, 0.25, 0.0
        %v391 = vsel %vm375, 0.25, 0.0
        %v392 = vsel %vm376, 0.25, 0.0
        %v393 = vsel %vm377, 0.25, 0.0
        %v394 = vsel %vm378, 0.25, 0.0
        %v395 = vsel %vm379, 0.25, 0.0
        %v396 = vsel %vm380, 0.25, 0.0
        %v397 = vsel %vm381, 0.25, 0.0
        %v398 = vsel %vm382, 0.25, 0.0
        %v399 = vsel %vm383, 0.25, 0.0
        %v400 = vsel %vm384, 0.25, 0.0
        %v401 = vsel %vm385, 0.25, 0.0
        %v402 = vadd.f32 %v350, %v386
        %v403 = vadd.f32 %v351, %v387
        %v404 = vadd.f32 %v352, %v388
        %v405 = vadd.f32 %v353, %v389
        %v406 = vadd.f32 %v354, %v390
        %v407 = vadd.f32 %v355, %v391
        %v408 = vadd.f32 %v356, %v392
        %v409 = vadd.f32 %v357, %v393
        %v410 = vadd.f32 %v358, %v394
        %v411 = vadd.f32 %v359, %v395
        %v412 = vadd.f32 %v360, %v396
        %v413 = vadd.f32 %v361, %v397
        %v414 = vadd.f32 %v362, %v398
        %v415 = vadd.f32 %v363, %v399
        %v416 = vadd.f32 %v364, %v400
        %v417 = vadd.f32 %v365, %v401
        %v418 = vld [vmem:[#allocation5] sm:$0xf]
        %v419 = vld [vmem:[#allocation5 + $0x4] sm:$0xf]
        %v420 = vld [vmem:[#allocation5 + $0x8] sm:$0xf]
        %v421 = vld [vmem:[#allocation5 + $0xc] sm:$0xf]
        %v422 = vpack.c.bf16 %v403, %v402
        %v423 = vpack.c.bf16 %v405, %v404
        %v424 = vpack.c.bf16 %v407, %v406
        %v425 = vpack.c.bf16 %v409, %v408
        %v426 = vpack.c.bf16 %v411, %v410
        %v427 = vpack.c.bf16 %v413, %v412
        %v428 = vpack.c.bf16 %v415, %v414
        %v429 = vpack.c.bf16 %v417, %v416
        %v434 = vunpack.c.l.b16 %v418
        %v435 = vunpack.c.l.b16 %v419
        %v436 = vunpack.c.l.b16 %v420
        %v437 = vunpack.c.l.b16 %v421
        %v438 = vpack.c.b16 %v435, %v434
        %v439 = vpack.c.b16 %v437, %v436
        %442 = vmatprep.subr.bf16.mxu0 0
        %443 = vmatpush1.bf16.msra.mxu0 %v422
        %444 = vmatprep.subr.bf16.mxu0 0
        %445 = vmatpush1.bf16.msra.mxu0 %v423
        %446 = vmatprep.subr.bf16.mxu0 0
        %447 = vmatpush1.bf16.msra.mxu0 %v424
        %448 = vmatprep.subr.bf16.mxu0 0
        %449 = vmatpush1.bf16.msra.mxu0 %v425
        %450 = vmatprep.subr.bf16.mxu0 0
        %451 = vmatpush1.bf16.msra.mxu0 %v426
        %452 = vmatprep.subr.bf16.mxu0 0
        %453 = vmatpush1.bf16.msra.mxu0 %v427
        %454 = vmatprep.subr.bf16.mxu0 0
        %455 = vmatpush1.bf16.msra.mxu0 %v428
        %456 = vmatprep.subr.bf16.mxu0 0
        %457 = vmatpush1.bf16.msra.mxu0 %v429
        %458 = vmatprep.subr.bf16.mxu0 0
        %459 = vmatpush1.bf16.msra.mxu0 0
        %460 = vmatprep.subr.bf16.mxu0 0
        %461 = vmatpush1.bf16.msra.mxu0 0
        %462 = vmatprep.subr.bf16.mxu0 0
        %463 = vmatpush1.bf16.msra.mxu0 0
        %464 = vmatprep.subr.bf16.mxu0 0
        %465 = vmatpush1.bf16.msra.mxu0 0
        %466 = vmatprep.subr.bf16.mxu0 0
        %467 = vmatpush1.bf16.msra.mxu0 0
        %468 = vmatprep.subr.bf16.mxu0 0
        %469 = vmatpush1.bf16.msra.mxu0 0
        %470 = vmatprep.subr.bf16.mxu0 0
        %471 = vmatpush1.bf16.msra.mxu0 0
        %472 = vmatprep.subr.bf16.mxu0 0
        %473 = vmatpush1.bf16.msra.mxu0 0
        %474 = vmatprep.mubr.bf16.mxu0 0
        %475 = vmatmul.mubr.bf16.gmra.mrb[0].mxu0 %v438
        %v476 = vpop.f32.mrb[0].mxu0
        %v477 = vadd.f32 0.0, %v476
        %v478 = vpop.f32.mrb[0].mxu0
        %v479 = vpop.f32.mrb[0].mxu0
        %v480 = vadd.f32 0.0, %v479
        %v481 = vpop.f32.mrb[0].mxu0
        %482 = vmatprep.mubr.bf16.mxu0 0
        %483 = vmatmul.mubr.bf16.gmra.mrb[0].mxu0 %v439
        %v484 = vpop.f32.mrb[0].mxu0
        %v485 = vadd.f32 0.0, %v484
        %v486 = vpop.f32.mrb[0].mxu0
        %v487 = vpop.f32.mrb[0].mxu0
        %v488 = vadd.f32 0.0, %v487
        %v489 = vpop.f32.mrb[0].mxu0
        %490 = vdwg.mxu0
        %491 = vst [vmem:[%s190] sm:$0xff] %v477
        %492 = vst [vmem:[%s190 + $0x8] sm:$0xff] %v480
        %493 = vst [vmem:[%s190 + $0x10] sm:$0xff] %v485
        %494 = vst [vmem:[%s190 + $0x18] sm:$0xff] %v488
        %s495 = sand.u32 %s91, 1
        %s496 = scalar_lea.sflag [#allocation4], %s495
        %s497 = sand.u32 %s91, 1
        %s498 = smul.addr %s497, 32
        %s499 = scalar_lea.vmem [#allocation7], %s498
        // Predicated region
        $region37: #{tpu_custom_call.1} parent=27 // pred_check
          %p500 = pneg %p101
        $region38: #{tpu_custom_call.1} parent=27 // pred_check_branch
          %502 = sbr.rel (%p500) target = $region40
        $region39: #{tpu_custom_call.1} parent=27 // pred_region
          %s504 = ssub.s32 512, 512
          %505 = vsyncadd %s496, %s504
          %s506 = smul.addr %s24, 4
          %s507 = sadd.s32 %s25, %s506
          %s508 = smul.addr %s507, 128
          %s509 = scalar_lea.hbm %s2, %s508
          %s510 = sshll.u32 %s499, 4
          %s511 = int_to_ptr.vmem [resolvable:$true] %s510
          %516 = dma.vmem_to_hbm [thread:$0]  %s511, 512, %s509, %s496, 128, 128, 8
        $region40: #{tpu_custom_call.1} parent=27 // pred_fallthru
          _
      $region28: #{tpu_custom_call.1} parent=5 // pred_fallthru
        _
      %p517 = scmp.le.s32.totalorder 2, %s15
      // Predicated region
      $region41: #{tpu_custom_call.1} parent=5 // pred_check
        %p518 = pneg %p517
      $region42: #{tpu_custom_call.1} parent=5 // pred_check_branch
        %520 = sbr.rel (%p518) target = $region44
      $region43: #{tpu_custom_call.1} parent=5 // pred_region
        %s521 = ssub.s32 %s15, 2
        // Predicated region
        $region45: #{tpu_custom_call.1} parent=43 // pred_check
          %p522 = pneg %p107
        $region46: #{tpu_custom_call.1} parent=43 // pred_check_branch
          %524 = sbr.rel (%p522) target = $region48
        $region47: #{tpu_custom_call.1} parent=43 // pred_region
          %s525 = sand.u32 %s92, 1
          %s526 = scalar_lea.sflag [#allocation4], %s525
          %s527 = sand.u32 %s92, 1
          %s528 = smul.addr %s527, 32
          %s529 = scalar_lea.vmem [#allocation7], %s528
          %530 = dma.done %s526, 512
        $region48: #{tpu_custom_call.1} parent=43 // pred_fallthru
          _
      $region44: #{tpu_custom_call.1} parent=5 // pred_fallthru
        _
    $region6: #{tpu_custom_call.1} parent=1 // loop_footer
      %s19 = sadd.s32 1, %s15
    $region7: #{tpu_custom_call.1} parent=1 // loop_footer_branch
      %14 = sbr.rel target = $region3
    $region8: #{tpu_custom_call.1} parent=1 // loop_exit
      _
    %531 = vsyncpa [#allocation3], 1
    %s532 = scalar_lea.sflag [#allocation3], 1
    %533 = vsyncpa %s532, 1
    %534 = vsyncpa [#allocation6], 1
    %535 = vsyncpa [#allocation4], 1
    %s536 = scalar_lea.sflag [#allocation4], 1
    %537 = vsyncpa %s536, 1

</llo_original>
